<compile_context>
chip_gen: v7x
topology: tpu7x:2x2x1
jax: 0.10.0
libtpu: 0.0.40
codegen_flags: <defaults>
</compile_context>

<pallas_src>
import functools

import jax
import jax.numpy as jnp
from jax import lax
from jax.experimental import pallas as pl
from jax.experimental.pallas import tpu as pltpu


def _round_up(n: int, m: int) -> int:
    return ((n + m - 1) // m) * m


@functools.lru_cache(maxsize=None)
def _strided_roll_is_numpy_convention() -> bool:
    """One-time probe of the strided lane-roll convention.

    Returns True  if pltpu.roll(x, 0, 1, stride=1, stride_axis=0)[q, j] == x[q, (j - q) % N]
            False if                                            ... == x[q, (j + q) % N]
    """
    def probe(x_ref, o_ref):
        o_ref[...] = pltpu.roll(x_ref[...], shift=0, axis=1, stride=1, stride_axis=0)

    j = lax.broadcasted_iota(jnp.float32, (8, 128), 1)
    out = pl.pallas_call(
        probe, out_shape=jax.ShapeDtypeStruct((8, 128), jnp.float32))(j)
    q = jnp.arange(8, dtype=jnp.float32)[:, None]
    if bool(jnp.all(out == (j - q) % 128)):
        return True
    if bool(jnp.all(out == (j + q) % 128)):
        return False
    raise NotImplementedError("unrecognized pltpu.roll stride convention")


def _make_kernel(W: int, take_high_lanes: bool):
    """Banded-similarity (MXU) + fc + bias + ReLU for one (tq, S_pad) row tile."""

    def kernel(xq_ref, klo_ref, khi_ref, wfc_ref, b_ref, out_ref):
        # Key window of this row tile: two consecutive tq-row blocks -> [W, S_pad].
        kwin = jnp.concatenate([klo_ref[...], khi_ref[...]], axis=0)
        # MXU: sim[q, j] = <query_q, key_j>  (A @ B^T, f32 accumulation).
        sim = lax.dot_general(
            xq_ref[...], kwin,
            dimension_numbers=(((1,), (1,)), ((), ())),
            preferred_element_type=jnp.float32)                       # [tq, W]
        # Strided lane-roll: row q rotated by q lanes -> the L banded diagonals
        # sim[q, q + l] land on fixed lanes (XLU, no per-l sublane relayouts).
        rolled = pltpu.roll(sim, shift=0, axis=1, stride=1, stride_axis=0)
        # Lane-dense K = 128 slice holding the band (aligned: W % 128 == 0).
        band = rolled[:, W - 128:] if take_high_lanes else rolled[:, :128]
        out = jnp.dot(band, wfc_ref[...], preferred_element_type=jnp.float32)
        out = out + b_ref[...]
        out_ref[...] = jnp.maximum(out, 0.0).astype(out_ref.dtype)

    return kernel


def frame_similarity_pallas(inputs, w_proj, w_fc, b_fc, lookup_window, *,
                            row_tile=512, compute_dtype=jnp.bfloat16):
    """inputs: list of [B, C_i, T, H, W] arrays.  Returns [B, T, output_dim] f32."""
    assert lookup_window % 2 == 1, "`lookup_window` must be odd integer"
    L = lookup_window
    half = (L - 1) // 2
    assert L <= 128, "fc contraction is packed into a single 128-lane K"

    # ---- glue + shallow projection + L2 normalize (hoisted into XLA) --------
    # TODO(synk): spatial mean / concat / K=in_filters projection stay in XLA;
    # they are too shallow to benefit from a Pallas MXU kernel.
    feat = jnp.concatenate([jnp.mean(x, axis=(3, 4)) for x in inputs], axis=1)
    feat = jnp.transpose(feat, (0, 2, 1)).astype(jnp.float32)         # [B, T, C]
    x = feat @ w_proj.astype(jnp.float32)                             # [B, T, S]
    norm = jnp.sqrt(jnp.sum(x * x, axis=-1, keepdims=True))
    x = (x / jnp.maximum(norm, 1e-12)).astype(compute_dtype)          # F.normalize

    B, T, S = x.shape
    assert w_fc.shape[0] == L
    O = w_fc.shape[1]

    # ---- tiling (tq multiple of 64 so W = 2*tq is a multiple of 128) --------
    min_tq = max(64, _round_up(L - 1, 64))       # 2*tq must cover tq + L - 1 keys
    tq = max(min_tq, min(_round_up(row_tile, 64), _round_up(T, 64)))
    if B == 1:
        # keep >= 2 parallel grid steps so both v7x TensorCores get work
        tq = max(min_tq, min(tq, _round_up(-(-T // 2), 64)))
    T_pad = _round_up(T, tq)
    nt = T_pad // tq
    W = 2 * tq                                    # key-window width per row tile
    S_pad = _round_up(S, 128)
    O_pad = _round_up(O, 128)

    # ---- padded operands (fed directly, no overlapping-window gather) -------
    xq = jnp.pad(x, ((0, 0), (0, T_pad - T), (0, S_pad - S)))         # queries
    R = (nt + 1) * tq                             # padded keys: xk[r] = x[r-half]
    xk = jnp.pad(x, ((0, 0), (half, R - half - T), (0, S_pad - S)))   # keys

    roll_np = _strided_roll_is_numpy_convention()
    wfc32 = w_fc.astype(jnp.float32)
    if roll_np:
        # rolled[q, W-1-l] == band[q, l]: time-reverse the keys (folded into the
        # padded layout) and right-align the reversed fc weights.
        xk_in = xk[:, ::-1, :]
        lo_map = lambda b, i: (b, nt - 1 - i, 0)
        hi_map = lambda b, i: (b, nt - i, 0)
        wfc_small = jnp.zeros((128, O_pad), jnp.float32)
        wfc_small = wfc_small.at[128 - L:, :O].set(wfc32[::-1, :])
    else:
        # rolled[q, l] == band[q, l]: keys in natural order, weights left-aligned.
        xk_in = xk
        lo_map = lambda b, i: (b, i, 0)
        hi_map = lambda b, i: (b, i + 1, 0)
        wfc_small = jnp.zeros((128, O_pad), jnp.float32)
        wfc_small = wfc_small.at[:L, :O].set(wfc32)
    bias = jnp.pad(b_fc.astype(jnp.float32).reshape(1, O), ((0, 0), (0, O_pad - O)))

    kernel = _make_kernel(W, take_high_lanes=roll_np)

    elt = x.dtype.itemsize
    flops = 2 * B * nt * (tq * W * S_pad + tq * 128 * O_pad)
    bytes_accessed = (B * T_pad * S_pad * elt          # queries (read once)
                      + 2 * B * T_pad * S_pad * elt    # keys (each row read twice)
                      + 128 * O_pad * 4 + O_pad * 4    # resident fc weights / bias
                      + B * T_pad * O_pad * elt)       # output

    out = pl.pallas_call(
        kernel,
        out_shape=jax.ShapeDtypeStruct((B, T_pad, O_pad), compute_dtype),
        grid_spec=pltpu.PrefetchScalarGridSpec(
            num_scalar_prefetch=0,
            grid=(B, nt),
            in_specs=[
                pl.BlockSpec((None, tq, S_pad), lambda b, i: (b, i, 0)),
                pl.BlockSpec((None, tq, S_pad), lo_map),
                pl.BlockSpec((None, tq, S_pad), hi_map),
                pl.BlockSpec((128, O_pad), lambda b, i: (0, 0)),   # resident
                pl.BlockSpec((1, O_pad), lambda b, i: (0, 0)),     # resident
            ],
            out_specs=pl.BlockSpec((None, tq, O_pad), lambda b, i: (b, i, 0)),
        ),
        compiler_params=pltpu.CompilerParams(
            dimension_semantics=("parallel", "parallel")),
        cost_estimate=pl.CostEstimate(
            flops=flops, transcendentals=0, bytes_accessed=bytes_accessed),
    )(xq, xk_in, xk_in, wfc_small, bias)

    # Slice off T / output_dim padding.
    return out[:, :T, :O].astype(jnp.float32)


def frame_similarity_ref(inputs, w_proj, w_fc, b_fc, lookup_window):
    """Pure-JAX f32 reference mirroring the PyTorch forward."""
    feat = jnp.concatenate([jnp.mean(x, axis=(3, 4)) for x in inputs], axis=1)
    x = jnp.transpose(feat, (0, 2, 1)).astype(jnp.float32)            # [B, T, C]
    x = x @ w_proj.astype(jnp.float32)                                # [B, T, S]
    norm = jnp.sqrt(jnp.sum(x * x, axis=-1, keepdims=True))
    x = x / jnp.maximum(norm, 1e-12)
    sim = jnp.einsum("btd,bud->btu", x, x)                            # [B, T, T]
    half = (lookup_window - 1) // 2
    sim_p = jnp.pad(sim, ((0, 0), (0, 0), (half, half)))
    _, T, _ = sim.shape
    t_idx = jnp.arange(T)[:, None]
    l_idx = jnp.arange(lookup_window)[None, :]
    band = sim_p[:, t_idx, t_idx + l_idx]                             # [B, T, L]
    return jax.nn.relu(band @ w_fc + b_fc)


if __name__ == "__main__":
    # small synthetic config (consistent with TransNetV2's FrameSimilarity)
    B, T, H, W_sp = 2, 8, 4, 4
    channel_splits = (3, 5)          # in_filters = 8
    in_filters = sum(channel_splits)
    similarity_dim = 32
    lookup_window = 9
    output_dim = 16

    key = jax.random.PRNGKey(0)
    k_in0, k_in1, k_wp, k_wf, k_bf = jax.random.split(key, 5)

    # list of NCTHW feature maps (as in TransNetV2)
    inputs = [
        jax.random.normal(k_in0, (B, channel_splits[0], T, H, W_sp), jnp.float32),
        jax.random.normal(k_in1, (B, channel_splits[1], T, H, W_sp), jnp.float32),
    ]
    # projection: nn.Linear(in_filters, similarity_dim, bias=False) -> stored [C, S]
    w_proj = jax.random.normal(k_wp, (in_filters, similarity_dim), jnp.float32) * 0.1
    # fc: nn.Linear(lookup_window, output_dim) -> stored [L, O], bias [O]
    w_fc = jax.random.normal(k_wf, (lookup_window, output_dim), jnp.float32) * 0.1
    b_fc = jax.random.normal(k_bf, (output_dim,), jnp.float32) * 0.1

    out = frame_similarity_pallas(inputs, w_proj, w_fc, b_fc, lookup_window)
    out = jax.block_until_ready(out)

    ref = frame_similarity_ref(inputs, w_proj, w_fc, b_fc, lookup_window)
    assert out.shape == (B, T, output_dim)
    # bf16 feature / output path -> loosened tolerance vs the f32 reference
    assert jnp.allclose(out, ref, atol=3e-2, rtol=3e-2), (
        f"mismatch vs reference, max abs err = {jnp.max(jnp.abs(out - ref))}")

    print("KERNEL_OK")
</pallas_src>

<mosaic_0001>
module attributes {stable_mosaic.version = 11 : i64} {
  func.func @probe(%arg0: memref<8x128xf32, #tpu.memory_space<vmem>>, %arg1: memref<8x128xf32, #tpu.memory_space<vmem>>) attributes {dimension_semantics = [], scalar_prefetch = 0 : i64, scratch_operands = 0 : i64, tpu.core_type = #tpu.core_type<tc>} {
    %c0 = arith.constant 0 : index
    %c0_0 = arith.constant 0 : index
    %0 = vector.load %arg0[%c0, %c0_0] : memref<8x128xf32, #tpu.memory_space<vmem>>, vector<8x128xf32>
    %c0_i32 = arith.constant 0 : i32
    %1 = tpu.dynamic_rotate %0 by %c0_i32 dim 1 {stride = 1 : si32, stride_dimension = 0 : si32} : vector<8x128xf32>, i32 -> vector<8x128xf32>
    %c0_1 = arith.constant 0 : index
    %c0_2 = arith.constant 0 : index
    %2 = vector.load %arg1[%c0_1, %c0_2] : memref<8x128xf32, #tpu.memory_space<vmem>>, vector<8x128xf32>
    tpu.vector_store %arg1[%c0_1, %c0_2], %1 {strides = array<i32>} : memref<8x128xf32, #tpu.memory_space<vmem>>, vector<8x128xf32>,
    return
  }
}

</mosaic_0001>

<llo_original>
// kernel: tpu_custom_call.1
$region0: #{tpu_custom_call.1}
  #allocation0 [shape = 'u32[]', space=smem, size = 0x4, offset = 0x4, fixed_abs, tag = 'smem constant byte address 0x4 - core index']
  #allocation1 [shape = 'u32[144,128]{1,0:T(1,128)}', space=vmem, size = 0x12000, scoped, tag = 'internal scratch']
  %s0 = inlined_call_operand.hbm [shape: f32[8,128], index: 0, kind: input, shape index: {}]
  %s1 = inlined_call_operand.hbm [shape: f32[8,128], index: 1, kind: output, shape index: {}]
  %s2 = sld [smem:[#allocation0]]
  $region18: #{tpu_custom_call.1} parent=0
    _
  %s4 = ssub.s32 1, %s2
  %s5 = scalar_select 0, %s4, %s2
  $region1: #{tpu_custom_call.1} parent=0
    #allocation2 [shape = 'u8[4096]{0}', space=vmem, size = 0x1000, scoped, tag = 'input window, operand 0, single buffered']
    #allocation3 [shape = 's32[1]{0}', space=sflag, size = 0x4, scoped, tag = 'scoped memory for tpu_custom_call.1']
    #allocation4 [shape = 's32[1]{0}', space=sflag, size = 0x4, scoped, tag = 'scoped memory for tpu_custom_call.1']
    #allocation5 [shape = 'u8[4096]{0}', space=vmem, size = 0x1000, scoped, tag = 'output window, operand 0, single buffered']
    %6 = vsyncpa [#allocation3], 0
    %7 = vsyncpa [#allocation4], 0
    // Predicated region
    $region2: #{tpu_custom_call.1} parent=1 // pred_check
      _
    $region3: #{tpu_custom_call.1} parent=1 // pred_check_branch
      %9 = sbr.rel (0) target = $region5
    $region4: #{tpu_custom_call.1} parent=1 // pred_region
      %s11 = ssub.s32 128, 128
      %12 = vsyncadd [#allocation3], %s11
      %s14 = sshll.u32 [#allocation2], 4
      %s15 = int_to_ptr.vmem [resolvable:$true] %s14
      %17 = dma.hbm_to_vmem [thread:$0]  %s0, 128, %s15, [#allocation3]
    $region5: #{tpu_custom_call.1} parent=1 // pred_fallthru
      _
    // Predicated region
    $region6: #{tpu_custom_call.1} parent=1 // pred_check
      _
    $region7: #{tpu_custom_call.1} parent=1 // pred_check_branch
      %19 = sbr.rel (0) target = $region9
    $region8: #{tpu_custom_call.1} parent=1 // pred_region
      %20 = dma.done [#allocation3], 128
    $region9: #{tpu_custom_call.1} parent=1 // pred_fallthru
      _
    %v21 = vld [vmem:[#allocation2] sm:$0xff]
    %23 = vrot.lane.b32.xlu0 %v21, 256
    %v24 = vpop.permute.xlu0 %23
    %25 = vst [vmem:[#allocation5] sm:$0xff] %v24
    // Predicated region
    $region10: #{tpu_custom_call.1} parent=1 // pred_check
      _
    $region11: #{tpu_custom_call.1} parent=1 // pred_check_branch
      %27 = sbr.rel (0) target = $region13
    $region12: #{tpu_custom_call.1} parent=1 // pred_region
      %s29 = ssub.s32 128, 128
      %30 = vsyncadd [#allocation4], %s29
      %s32 = sshll.u32 [#allocation5], 4
      %s33 = int_to_ptr.vmem [resolvable:$true] %s32
      %35 = dma.vmem_to_hbm [thread:$0]  %s33, 128, %s1, [#allocation4]
    $region13: #{tpu_custom_call.1} parent=1 // pred_fallthru
      _
    // Predicated region
    $region14: #{tpu_custom_call.1} parent=1 // pred_check
      _
    $region15: #{tpu_custom_call.1} parent=1 // pred_check_branch
      %37 = sbr.rel (0) target = $region17
    $region16: #{tpu_custom_call.1} parent=1 // pred_region
      %38 = dma.done [#allocation4], 128
    $region17: #{tpu_custom_call.1} parent=1 // pred_fallthru
      _
    %39 = vsyncpa [#allocation3], 1
    %40 = vsyncpa [#allocation4], 1

</llo_original>
